<compile_context>
chip_gen: v6e
topology: v6e:2x2x1
jax: 0.10.0
libtpu: 0.0.40
codegen_flags: <defaults>
</compile_context>

<pallas_src>
import functools

import jax
import jax.numpy as jnp
from jax.experimental import pallas as pl
from jax.experimental.pallas import tpu as pltpu

_LANES = 128


def _dice_partials_kernel(x_ref, t_ref, out_ref, *, valid_rows, needs_mask):
    """Per-block partial sums.

    out_ref block: (1, 2, LANES) f32
      out[0, 0, :] = per-lane sum of x*t over this block's rows
      out[0, 1, :] = per-lane sum of x+t over this block's rows
    """
    x = x_ref[...].astype(jnp.float32)
    t = t_ref[...].astype(jnp.float32)

    if needs_mask:
        # Last block may extend past the real data; zero out-of-range rows.
        tile_rows = x_ref.shape[0]
        row0 = pl.program_id(0) * tile_rows
        row_ids = jax.lax.broadcasted_iota(jnp.int32, (tile_rows, 1), 0) + row0
        valid = row_ids < valid_rows
        zero = jnp.float32(0.0)
        x = jnp.where(valid, x, zero)
        t = jnp.where(valid, t, zero)

    # Sublane (axis 0) reductions only; the cross-lane reduce of the tiny
    # partials happens once, outside the kernel.
    out_ref[0, 0:1, :] = jnp.sum(x * t, axis=0, keepdims=True)
    out_ref[0, 1:2, :] = jnp.sum(x + t, axis=0, keepdims=True)


def dice_loss(inputs, targets, smooth=1.0, *, block_bytes=2 * 1024 * 1024):
    """Pallas TPU implementation of DiceLoss.forward."""
    assert inputs.shape == targets.shape, "inputs/targets must have same shape"

    # Flatten in native dtype (no upcast here; the kernel casts to f32).
    x = jnp.ravel(inputs)
    t = jnp.ravel(targets)
    n = x.shape[0]

    # Reshape needs the element count to be a multiple of the lane width; pad
    # minimally (zeros are sum-neutral) only when required.
    rem = n % _LANES
    if rem:
        pad = _LANES - rem
        x = jnp.pad(x, (0, pad))
        t = jnp.pad(t, (0, pad))
    rows = x.shape[0] // _LANES
    x2 = x.reshape(rows, _LANES)
    t2 = t.reshape(rows, _LANES)

    # Pick a large, DMA-friendly block: ~block_bytes per input per step,
    # contiguous in HBM (full 128-wide rows), sublane count multiple of 8.
    itemsize = max(jnp.dtype(x2.dtype).itemsize, jnp.dtype(t2.dtype).itemsize)
    max_tile_rows = max(8, (block_bytes // (_LANES * itemsize)) // 8 * 8)
    if rows <= max_tile_rows:
        tile_rows = rows          # single block covering the full array
        num_blocks = 1
    else:
        tile_rows = max_tile_rows
        num_blocks = pl.cdiv(rows, tile_rows)
    needs_mask = (num_blocks * tile_rows) != rows

    kernel = functools.partial(
        _dice_partials_kernel, valid_rows=rows, needs_mask=needs_mask
    )

    partials = pl.pallas_call(
        kernel,
        out_shape=jax.ShapeDtypeStruct((num_blocks, 2, _LANES), jnp.float32),
        grid_spec=pltpu.PrefetchScalarGridSpec(
            num_scalar_prefetch=0,
            grid=(num_blocks,),
            in_specs=[
                pl.BlockSpec((tile_rows, _LANES), lambda i: (i, 0)),
                pl.BlockSpec((tile_rows, _LANES), lambda i: (i, 0)),
            ],
            out_specs=pl.BlockSpec((1, 2, _LANES), lambda i: (i, 0, 0)),
        ),
        compiler_params=pltpu.CompilerParams(
            # Independent per-block partials -> parallel (uses both TCs on v7x;
            # neutral on single-TC v5e/v6e).
            dimension_semantics=("parallel",),
            # Explicit budget: 2 inputs x 2 buffers x ~2 MiB blocks + output
            # stays comfortably inside this on all generations.
            vmem_limit_bytes=32 * 1024 * 1024,
        ),
    )(x2, t2)

    # Tiny final combine on the partials (a handful of scalar ops).
    intersection = jnp.sum(partials[:, 0, :])
    total = jnp.sum(partials[:, 1, :])  # = sum(inputs) + sum(targets)
    smooth = jnp.float32(smooth)
    dice = (2.0 * intersection + smooth) / (total + smooth)
    return (1.0 - dice).astype(jnp.float32)


if __name__ == "__main__":
    key = jax.random.PRNGKey(0)
    k1, k2 = jax.random.split(key)

    # Small shapes consistent with a segmentation-style use of DiceLoss.
    B, C, H, W = 2, 4, 16, 16
    logits = jax.random.normal(k1, (B, C, H, W), dtype=jnp.float32)
    inputs = jax.nn.sigmoid(logits)                          # predictions in [0,1]
    targets = (jax.random.uniform(k2, (B, C, H, W)) > 0.5).astype(jnp.float32)

    loss = dice_loss(inputs, targets, smooth=1.0)
    loss = jax.block_until_ready(loss)

    # Pure-JAX reference check.
    xi = inputs.reshape(-1)
    ti = targets.reshape(-1)
    inter = jnp.sum(xi * ti)
    dice_ref = (2.0 * inter + 1.0) / (jnp.sum(xi) + jnp.sum(ti) + 1.0)
    ref = 1.0 - dice_ref
    assert jnp.allclose(loss, ref, rtol=1e-5, atol=1e-5), (loss, ref)

    print("KERNEL_OK")
</pallas_src>

<mosaic_0001>
module attributes {stable_mosaic.version = 11 : i64} {
  func.func @_dice_partials_kernel(%arg0: i32, %arg1: memref<16x128xf32, #tpu.memory_space<vmem>>, %arg2: memref<16x128xf32, #tpu.memory_space<vmem>>, %arg3: memref<1x2x128xf32, #tpu.memory_space<vmem>>) attributes {dimension_semantics = [#tpu.dimension_semantics<parallel>], iteration_bounds = array<i64: 1>, scalar_prefetch = 0 : i64, scratch_operands = 0 : i64, tpu.core_type = #tpu.core_type<tc>, window_params = [{transform_indices = @transform_0, window_bounds = array<i64: 16, 128>}, {transform_indices = @transform_1, window_bounds = array<i64: 16, 128>}, {transform_indices = @transform_2, window_bounds = array<i64: 1, 2, 128>}]} {
    %c0 = arith.constant 0 : index
    %c0_0 = arith.constant 0 : index
    %0 = vector.load %arg1[%c0, %c0_0] : memref<16x128xf32, #tpu.memory_space<vmem>>, vector<16x128xf32>
    %c0_1 = arith.constant 0 : index
    %c0_2 = arith.constant 0 : index
    %1 = vector.load %arg2[%c0_1, %c0_2] : memref<16x128xf32, #tpu.memory_space<vmem>>, vector<16x128xf32>
    %2 = arith.mulf %0, %1 : vector<16x128xf32>
    %cst = arith.constant dense<0.000000e+00> : vector<128xf32>
    %3 = vector.multi_reduction <add>, %2, %cst [0] : vector<16x128xf32> to vector<128xf32>
    %4 = vector.shape_cast %3 : vector<128xf32> to vector<1x128xf32>
    %c0_3 = arith.constant 0 : index
    %c0_4 = arith.constant 0 : index
    %c0_5 = arith.constant 0 : index
    %5 = vector.load %arg3[%c0_3, %c0_4, %c0_5] : memref<1x2x128xf32, #tpu.memory_space<vmem>>, vector<1x1x128xf32>
    %6 = vector.shape_cast %5 : vector<1x1x128xf32> to vector<1x128xf32>
    %7 = vector.shape_cast %4 : vector<1x128xf32> to vector<1x1x128xf32>
    tpu.vector_store %arg3[%c0_3, %c0_4, %c0_5], %7 {strides = array<i32>} : memref<1x2x128xf32, #tpu.memory_space<vmem>>, vector<1x1x128xf32>,
    %8 = arith.addf %0, %1 : vector<16x128xf32>
    %cst_6 = arith.constant dense<0.000000e+00> : vector<128xf32>
    %9 = vector.multi_reduction <add>, %8, %cst_6 [0] : vector<16x128xf32> to vector<128xf32>
    %10 = vector.shape_cast %9 : vector<128xf32> to vector<1x128xf32>
    %c0_7 = arith.constant 0 : index
    %c1 = arith.constant 1 : index
    %c0_8 = arith.constant 0 : index
    %11 = vector.load %arg3[%c0_7, %c1, %c0_8] : memref<1x2x128xf32, #tpu.memory_space<vmem>>, vector<1x1x128xf32>
    %12 = vector.shape_cast %11 : vector<1x1x128xf32> to vector<1x128xf32>
    %13 = vector.shape_cast %10 : vector<1x128xf32> to vector<1x1x128xf32>
    tpu.vector_store %arg3[%c0_7, %c1, %c0_8], %13 {strides = array<i32>} : memref<1x2x128xf32, #tpu.memory_space<vmem>>, vector<1x1x128xf32>,
    return
  }
  func.func @transform_0(%arg0: i32) -> (i32, i32) {
    %c0_i32 = arith.constant 0 : i32
    %c0_i32_0 = arith.constant 0 : i32
    return %arg0, %c0_i32 : i32, i32
  }
  func.func @transform_1(%arg0: i32) -> (i32, i32) {
    %c0_i32 = arith.constant 0 : i32
    %c0_i32_0 = arith.constant 0 : i32
    return %arg0, %c0_i32 : i32, i32
  }
  func.func @transform_2(%arg0: i32) -> (i32, i32, i32) {
    %c0_i32 = arith.constant 0 : i32
    %c0_i32_0 = arith.constant 0 : i32
    %c0_i32_1 = arith.constant 0 : i32
    return %arg0, %c0_i32, %c0_i32_0 : i32, i32, i32
  }
}

</mosaic_0001>

<llo_original>
// kernel: tpu_custom_call.1
$region0: #{tpu_custom_call.1}
  #allocation0 [shape = 'u32[]', space=smem, size = 0x4, offset = 0x4, fixed_abs, tag = 'smem constant byte address 0x4 - core index']
  #allocation1 [shape = 'u32[144,128]{1,0:T(1,128)}', space=vmem, size = 0x12000, scoped, tag = 'internal scratch']
  %s0 = inlined_call_operand.hbm [shape: f32[16,128], index: 0, kind: input, shape index: {}]
  %s1 = inlined_call_operand.hbm [shape: f32[16,128], index: 1, kind: input, shape index: {}]
  %s2 = inlined_call_operand.hbm [shape: f32[1,2,128], index: 2, kind: output, shape index: {}]
  %s3 = sld [smem:[#allocation0]]
  $region26: #{tpu_custom_call.1} parent=0
    _
  %s5 = ssub.s32 1, %s3
  %s6 = scalar_select 0, %s5, %s3
  $region1: #{tpu_custom_call.1} parent=0
    #allocation2 [shape = 'u8[8192]{0}', space=vmem, size = 0x2000, scoped, tag = 'input window, operand 0, single buffered']
    #allocation3 [shape = 's32[1]{0}', space=sflag, size = 0x4, scoped, tag = 'scoped memory for tpu_custom_call.1']
    #allocation4 [shape = 's32[1]{0}', space=sflag, size = 0x4, scoped, tag = 'scoped memory for tpu_custom_call.1']
    #allocation5 [shape = 'u8[8192]{0}', space=vmem, size = 0x2000, scoped, tag = 'input window, operand 1, single buffered']
    #allocation6 [shape = 's32[1]{0}', space=sflag, size = 0x4, scoped, tag = 'scoped memory for tpu_custom_call.1']
    #allocation7 [shape = 'u8[1024]{0}', space=vmem, size = 0x400, scoped, tag = 'output window, operand 0, single buffered']
    %7 = vsyncpa [#allocation3], 0
    %8 = vsyncpa [#allocation6], 0
    %9 = vsyncpa [#allocation4], 0
    // Predicated region
    $region2: #{tpu_custom_call.1} parent=1 // pred_check
      _
    $region3: #{tpu_custom_call.1} parent=1 // pred_check_branch
      %11 = sbr.rel (0) target = $region5
    $region4: #{tpu_custom_call.1} parent=1 // pred_region
      %s13 = ssub.s32 256, 256
      %14 = vsyncadd [#allocation3], %s13
      %s15 = sshll.u32 [#allocation2], 4
      %s16 = int_to_ptr.vmem [resolvable:$true] %s15
      %21 = dma.hbm_to_vmem [thread:$0]  %s0, 256, %s16, [#allocation3], 128, 128, 8
    $region5: #{tpu_custom_call.1} parent=1 // pred_fallthru
      _
    // Predicated region
    $region6: #{tpu_custom_call.1} parent=1 // pred_check
      _
    $region7: #{tpu_custom_call.1} parent=1 // pred_check_branch
      %23 = sbr.rel (0) target = $region9
    $region8: #{tpu_custom_call.1} parent=1 // pred_region
      %s25 = ssub.s32 256, 256
      %26 = vsyncadd [#allocation6], %s25
      %s27 = sshll.u32 [#allocation5], 4
      %s28 = int_to_ptr.vmem [resolvable:$true] %s27
      %33 = dma.hbm_to_vmem [thread:$0]  %s1, 256, %s28, [#allocation6], 128, 128, 8
    $region9: #{tpu_custom_call.1} parent=1 // pred_fallthru
      _
    // Predicated region
    $region10: #{tpu_custom_call.1} parent=1 // pred_check
      _
    $region11: #{tpu_custom_call.1} parent=1 // pred_check_branch
      %35 = sbr.rel (0) target = $region13
    $region12: #{tpu_custom_call.1} parent=1 // pred_region
      %36 = dma.done [#allocation3], 256
    $region13: #{tpu_custom_call.1} parent=1 // pred_fallthru
      _
    // Predicated region
    $region14: #{tpu_custom_call.1} parent=1 // pred_check
      _
    $region15: #{tpu_custom_call.1} parent=1 // pred_check_branch
      %38 = sbr.rel (0) target = $region17
    $region16: #{tpu_custom_call.1} parent=1 // pred_region
      %39 = dma.done [#allocation6], 256
    $region17: #{tpu_custom_call.1} parent=1 // pred_fallthru
      _
    %v40 = vld [vmem:[#allocation2] sm:$0xff]
    %v41 = vld [vmem:[#allocation2 + $0x8] sm:$0xff]
    %v42 = vld [vmem:[#allocation5] sm:$0xff]
    %v43 = vld [vmem:[#allocation5 + $0x8] sm:$0xff]
    %v44 = vmul.f32 %v40, %v42
    %v45 = vmul.f32 %v41, %v43
    %v46 = vadd.f32 %v44, %v45
    %v47 = vrot.slane %v46, 4
    %v48 = vadd.f32 %v46, %v47
    %v49 = vrot.slane %v48, 2
    %v50 = vadd.f32 %v48, %v49
    %v51 = vrot.slane %v50, 1
    %v52 = vadd.f32 %v50, %v51
    %53 = vst [vmem:[#allocation7] sm:$0x1] %v52
    %v54 = vadd.f32 %v40, %v42
    %v55 = vadd.f32 %v41, %v43
    %v56 = vadd.f32 %v54, %v55
    %v57 = vrot.slane %v56, 4
    %v58 = vadd.f32 %v56, %v57
    %v59 = vrot.slane %v58, 2
    %v60 = vadd.f32 %v58, %v59
    %v61 = vrot.slane %v60, 1
    %v62 = vadd.f32 %v60, %v61
    %63 = vst [vmem:[#allocation7 + $0x1] sm:$0x1] %v62
    // Predicated region
    $region18: #{tpu_custom_call.1} parent=1 // pred_check
      _
    $region19: #{tpu_custom_call.1} parent=1 // pred_check_branch
      %65 = sbr.rel (0) target = $region21
    $region20: #{tpu_custom_call.1} parent=1 // pred_region
      %s67 = ssub.s32 32, 32
      %68 = vsyncadd [#allocation4], %s67
      %s70 = sshll.u32 [#allocation7], 4
      %s71 = int_to_ptr.vmem [resolvable:$true] %s70
      %73 = dma.vmem_to_hbm [thread:$0]  %s71, 32, %s2, [#allocation4]
    $region21: #{tpu_custom_call.1} parent=1 // pred_fallthru
      _
    // Predicated region
    $region22: #{tpu_custom_call.1} parent=1 // pred_check
      _
    $region23: #{tpu_custom_call.1} parent=1 // pred_check_branch
      %75 = sbr.rel (0) target = $region25
    $region24: #{tpu_custom_call.1} parent=1 // pred_region
      %76 = dma.done [#allocation4], 32
    $region25: #{tpu_custom_call.1} parent=1 // pred_fallthru
      _
    %77 = vsyncpa [#allocation3], 1
    %78 = vsyncpa [#allocation6], 1
    %79 = vsyncpa [#allocation4], 1

</llo_original>
